<compile_context>
chip_gen: v6e
topology: v6e:2x2x1
jax: 0.10.0
libtpu: 0.0.40
codegen_flags: <defaults>
</compile_context>

<pallas_src>
import jax
import jax.numpy as jnp
from jax.experimental import pallas as pl
from jax.experimental.pallas import tpu as pltpu

_LANE = 128


def _round_up(x, m):
    return ((x + m - 1) // m) * m


def _mlp_kernel(x_ref, w1_ref, b1_ref, w2_ref, b2_ref, w3_ref, b3_ref, o_ref):
    # Transposed layout: activations are (features, batch_tile).
    xt = x_ref[...].astype(jnp.float32)          # (d_in, bb)
    d_in = xt.shape[0]
    d_out = o_ref.shape[0]

    # fc1 (d_in -> 64): K is tiny -> unrolled VPU broadcast-FMAs, not the MXU.
    w1 = w1_ref[...]                              # (64, d_in)
    h = b1_ref[...]                               # (64, 1), broadcasts over lanes
    for f in range(d_in):
        h = h + w1[:, f:f + 1] * xt[f:f + 1, :]   # (64, bb)
    h = jnp.maximum(h, 0.0)

    # fc2 (64 -> 64): the only real matmul; batch is the MXU N dimension.
    h = jnp.dot(w2_ref[...], h, preferred_element_type=jnp.float32) + b2_ref[...]
    h = jnp.maximum(h, 0.0)                       # (64, bb)

    # fc3 (64 -> d_out): N is tiny -> per-class sublane reductions (XLU slot).
    w3 = w3_ref[...]                              # (64, d_out)
    b3 = b3_ref[...]                              # (d_out, 1)
    logits = [
        jnp.sum(w3[:, c:c + 1] * h, axis=0, keepdims=True) + b3[c:c + 1, :]
        for c in range(d_out)
    ]                                             # d_out x (1, bb)

    # Numerically-stable log_softmax over classes (== torch dim=1).
    # Elementwise per batch column -- no cross-lane reduction needed.
    m = logits[0]
    for c in range(1, d_out):
        m = jnp.maximum(m, logits[c])
    s = jnp.exp(logits[0] - m)
    for c in range(1, d_out):
        s = s + jnp.exp(logits[c] - m)
    lse = m + jnp.log(s)

    out_rows = [logits[c] - lse for c in range(d_out)]
    o_ref[...] = jnp.concatenate(out_rows, axis=0).astype(o_ref.dtype)  # (d_out, bb)


def mlp_forward(x, params, *, block_batch=2048):
    """Fused MLP forward. x: (B, d_in) float32 -> (B, d_out) float32 log-probs."""
    w1, b1, w2, b2, w3, b3 = params
    B, d_in = x.shape
    hidden = w1.shape[0]
    d_out = w3.shape[1]
    assert w1.shape == (hidden, d_in) and b1.shape == (hidden, 1)
    assert w2.shape == (hidden, hidden) and b2.shape == (hidden, 1)
    assert w3.shape == (hidden, d_out) and b3.shape == (d_out, 1)

    # Batch goes on the lane axis: pad to a lane multiple, tile it coarsely.
    B_pad = _round_up(B, _LANE)
    bb = min(_round_up(block_batch, _LANE), B_pad)
    # Keep >=2 balanced grid steps when the batch allows it (v7x has 2 TCs).
    if B_pad // bb < 2 and B_pad >= 2 * _LANE:
        bb = _round_up(B_pad // 2, _LANE)
    B_pad = _round_up(B_pad, bb)

    # (d_in, B_pad) transposed & zero-padded input (pad columns are sliced off).
    xt = jnp.zeros((d_in, B_pad), jnp.float32).at[:, :B].set(x.T)

    grid = (B_pad // bb,)
    rep = lambda shape: pl.BlockSpec(shape, lambda i: (0, 0))  # replicated params

    out_t = pl.pallas_call(
        _mlp_kernel,
        out_shape=jax.ShapeDtypeStruct((d_out, B_pad), jnp.float32),
        grid_spec=pltpu.PrefetchScalarGridSpec(
            num_scalar_prefetch=0,
            grid=grid,
            in_specs=[
                pl.BlockSpec((d_in, bb), lambda i: (0, i)),   # x tile (lane-dense)
                rep(w1.shape), rep(b1.shape),
                rep(w2.shape), rep(b2.shape),
                rep(w3.shape), rep(b3.shape),
            ],
            out_specs=pl.BlockSpec((d_out, bb), lambda i: (0, i)),  # lane-dense store
        ),
        compiler_params=pltpu.CompilerParams(
            dimension_semantics=("parallel",)),
    )(xt, w1, b1, w2, b2, w3, b3)

    return out_t[:, :B].T


def init_params(key, input_layer=2, output_layer=2, hidden=64):
    """PyTorch nn.Linear default init: U(-1/sqrt(fan_in), 1/sqrt(fan_in)).

    Kernel-friendly layouts:
      w1: (hidden, in),     b1: (hidden, 1)
      w2: (hidden, hidden), b2: (hidden, 1)   (PyTorch (out, in) layout)
      w3: (hidden, out),    b3: (out, 1)
    """
    ks = jax.random.split(key, 6)

    def linear(kw, kb, fan_in, w_shape, b_shape):
        bound = 1.0 / jnp.sqrt(jnp.float32(fan_in))
        w = jax.random.uniform(kw, w_shape, jnp.float32, -bound, bound)
        b = jax.random.uniform(kb, b_shape, jnp.float32, -bound, bound)
        return w, b

    w1, b1 = linear(ks[0], ks[1], input_layer, (hidden, input_layer), (hidden, 1))
    w2, b2 = linear(ks[2], ks[3], hidden, (hidden, hidden), (hidden, 1))
    w3, b3 = linear(ks[4], ks[5], hidden, (hidden, output_layer), (output_layer, 1))
    return (w1, b1, w2, b2, w3, b3)


def _reference(x, params):
    w1, b1, w2, b2, w3, b3 = params
    h = jnp.maximum(x @ w1.T + b1.T, 0.0)
    h = jnp.maximum(h @ w2.T + b2.T, 0.0)
    logits = h @ w3 + b3.T
    return jax.nn.log_softmax(logits, axis=1)


if __name__ == "__main__":
    key = jax.random.PRNGKey(0)
    k_param, k_x = jax.random.split(key)

    input_layer, output_layer = 2, 2
    batch = 200  # small; non-multiple-of-128 exercises lane padding + a 2-step grid

    params = init_params(k_param, input_layer, output_layer)
    x = jax.random.normal(k_x, (batch, input_layer), jnp.float32)

    out = mlp_forward(x, params)
    out = jax.block_until_ready(out)

    ref = _reference(x, params)
    assert out.shape == (batch, output_layer)
    assert jnp.allclose(out, ref, atol=1e-5, rtol=1e-5), "mismatch vs. JAX reference"

    print("KERNEL_OK")
</pallas_src>

<mosaic_0001>
module attributes {stable_mosaic.version = 11 : i64} {
  func.func @_mlp_kernel(%arg0: i32, %arg1: memref<2x128xf32, #tpu.memory_space<vmem>>, %arg2: memref<64x2xf32, #tpu.memory_space<vmem>>, %arg3: memref<64x1xf32, #tpu.memory_space<vmem>>, %arg4: memref<64x64xf32, #tpu.memory_space<vmem>>, %arg5: memref<64x1xf32, #tpu.memory_space<vmem>>, %arg6: memref<64x2xf32, #tpu.memory_space<vmem>>, %arg7: memref<2x1xf32, #tpu.memory_space<vmem>>, %arg8: memref<2x128xf32, #tpu.memory_space<vmem>>) attributes {dimension_semantics = [#tpu.dimension_semantics<parallel>], iteration_bounds = array<i64: 2>, scalar_prefetch = 0 : i64, scratch_operands = 0 : i64, tpu.core_type = #tpu.core_type<tc>, window_params = [{transform_indices = @transform_0, window_bounds = array<i64: 2, 128>}, {pipeline_mode = #tpu.pipeline_mode<synchronous>, transform_indices = @transform_1, window_bounds = array<i64: 64, 2>}, {pipeline_mode = #tpu.pipeline_mode<synchronous>, transform_indices = @transform_2, window_bounds = array<i64: 64, 1>}, {pipeline_mode = #tpu.pipeline_mode<synchronous>, transform_indices = @transform_3, window_bounds = array<i64: 64, 64>}, {pipeline_mode = #tpu.pipeline_mode<synchronous>, transform_indices = @transform_4, window_bounds = array<i64: 64, 1>}, {pipeline_mode = #tpu.pipeline_mode<synchronous>, transform_indices = @transform_5, window_bounds = array<i64: 64, 2>}, {pipeline_mode = #tpu.pipeline_mode<synchronous>, transform_indices = @transform_6, window_bounds = array<i64: 2, 1>}, {transform_indices = @transform_7, window_bounds = array<i64: 2, 128>}]} {
    %c0 = arith.constant 0 : index
    %c0_0 = arith.constant 0 : index
    %0 = vector.load %arg1[%c0, %c0_0] : memref<2x128xf32, #tpu.memory_space<vmem>>, vector<2x128xf32>
    %c0_1 = arith.constant 0 : index
    %c0_2 = arith.constant 0 : index
    %1 = vector.load %arg2[%c0_1, %c0_2] : memref<64x2xf32, #tpu.memory_space<vmem>>, vector<64x2xf32>
    %c0_3 = arith.constant 0 : index
    %c0_4 = arith.constant 0 : index
    %2 = vector.load %arg3[%c0_3, %c0_4] : memref<64x1xf32, #tpu.memory_space<vmem>>, vector<64x1xf32>
    %3 = vector.extract_strided_slice %1 {offsets = [0, 0], sizes = [64, 1], strides = [1, 1]} : vector<64x2xf32> to vector<64x1xf32>
    %4 = vector.extract_strided_slice %0 {offsets = [0, 0], sizes = [1, 128], strides = [1, 1]} : vector<2x128xf32> to vector<1x128xf32>
    %5 = vector.broadcast %3 : vector<64x1xf32> to vector<64x128xf32>
    %6 = vector.broadcast %4 : vector<1x128xf32> to vector<64x128xf32>
    %7 = arith.mulf %5, %6 : vector<64x128xf32>
    %8 = vector.broadcast %2 : vector<64x1xf32> to vector<64x128xf32>
    %9 = arith.addf %8, %7 : vector<64x128xf32>
    %10 = vector.extract_strided_slice %1 {offsets = [0, 1], sizes = [64, 1], strides = [1, 1]} : vector<64x2xf32> to vector<64x1xf32>
    %11 = vector.extract_strided_slice %0 {offsets = [1, 0], sizes = [1, 128], strides = [1, 1]} : vector<2x128xf32> to vector<1x128xf32>
    %12 = vector.broadcast %10 : vector<64x1xf32> to vector<64x128xf32>
    %13 = vector.broadcast %11 : vector<1x128xf32> to vector<64x128xf32>
    %14 = arith.mulf %12, %13 : vector<64x128xf32>
    %15 = arith.addf %9, %14 : vector<64x128xf32>
    %cst = arith.constant 0.000000e+00 : f32
    %16 = vector.broadcast %cst : f32 to vector<64x128xf32>
    %17 = arith.maximumf %15, %16 : vector<64x128xf32>
    %c0_5 = arith.constant 0 : index
    %c0_6 = arith.constant 0 : index
    %18 = vector.load %arg4[%c0_5, %c0_6] : memref<64x64xf32, #tpu.memory_space<vmem>>, vector<64x64xf32>
    %cst_7 = arith.constant dense<0.000000e+00> : vector<64x128xf32>
    %19 = tpu.matmul %18, %17, %cst_7 {dimension_numbers = #tpu.dot_dimension_numbers<[1], [0], [0], [1], [0, 0, 1, 1], [], []>} : vector<64x64xf32>, vector<64x128xf32>, vector<64x128xf32> -> vector<64x128xf32>
    %c0_8 = arith.constant 0 : index
    %c0_9 = arith.constant 0 : index
    %20 = vector.load %arg5[%c0_8, %c0_9] : memref<64x1xf32, #tpu.memory_space<vmem>>, vector<64x1xf32>
    %21 = vector.broadcast %20 : vector<64x1xf32> to vector<64x128xf32>
    %22 = arith.addf %19, %21 : vector<64x128xf32>
    %cst_10 = arith.constant 0.000000e+00 : f32
    %23 = vector.broadcast %cst_10 : f32 to vector<64x128xf32>
    %24 = arith.maximumf %22, %23 : vector<64x128xf32>
    %c0_11 = arith.constant 0 : index
    %c0_12 = arith.constant 0 : index
    %25 = vector.load %arg6[%c0_11, %c0_12] : memref<64x2xf32, #tpu.memory_space<vmem>>, vector<64x2xf32>
    %c0_13 = arith.constant 0 : index
    %c0_14 = arith.constant 0 : index
    %26 = vector.load %arg7[%c0_13, %c0_14] : memref<2x1xf32, #tpu.memory_space<vmem>>, vector<2x1xf32>
    %27 = vector.extract_strided_slice %25 {offsets = [0, 0], sizes = [64, 1], strides = [1, 1]} : vector<64x2xf32> to vector<64x1xf32>
    %28 = vector.broadcast %27 : vector<64x1xf32> to vector<64x128xf32>
    %29 = arith.mulf %28, %24 : vector<64x128xf32>
    %cst_15 = arith.constant dense<0.000000e+00> : vector<128xf32>
    %30 = vector.multi_reduction <add>, %29, %cst_15 [0] : vector<64x128xf32> to vector<128xf32>
    %31 = vector.shape_cast %30 : vector<128xf32> to vector<1x128xf32>
    %32 = vector.extract_strided_slice %26 {offsets = [0, 0], sizes = [1, 1], strides = [1, 1]} : vector<2x1xf32> to vector<1x1xf32>
    %33 = vector.broadcast %32 : vector<1x1xf32> to vector<1x128xf32>
    %34 = arith.addf %31, %33 : vector<1x128xf32>
    %35 = vector.extract_strided_slice %25 {offsets = [0, 1], sizes = [64, 1], strides = [1, 1]} : vector<64x2xf32> to vector<64x1xf32>
    %36 = vector.broadcast %35 : vector<64x1xf32> to vector<64x128xf32>
    %37 = arith.mulf %36, %24 : vector<64x128xf32>
    %cst_16 = arith.constant dense<0.000000e+00> : vector<128xf32>
    %38 = vector.multi_reduction <add>, %37, %cst_16 [0] : vector<64x128xf32> to vector<128xf32>
    %39 = vector.shape_cast %38 : vector<128xf32> to vector<1x128xf32>
    %40 = vector.extract_strided_slice %26 {offsets = [1, 0], sizes = [1, 1], strides = [1, 1]} : vector<2x1xf32> to vector<1x1xf32>
    %41 = vector.broadcast %40 : vector<1x1xf32> to vector<1x128xf32>
    %42 = arith.addf %39, %41 : vector<1x128xf32>
    %43 = arith.maximumf %34, %42 : vector<1x128xf32>
    %44 = arith.subf %34, %43 : vector<1x128xf32>
    %45 = math.exp %44 : vector<1x128xf32>
    %46 = arith.subf %42, %43 : vector<1x128xf32>
    %47 = math.exp %46 : vector<1x128xf32>
    %48 = arith.addf %45, %47 : vector<1x128xf32>
    %49 = math.log %48 : vector<1x128xf32>
    %50 = arith.addf %43, %49 : vector<1x128xf32>
    %51 = arith.subf %34, %50 : vector<1x128xf32>
    %52 = arith.subf %42, %50 : vector<1x128xf32>
    %53 = tpu.concatenate %51, %52 in 0 : vector<1x128xf32>, vector<1x128xf32> -> vector<2x128xf32>
    %c0_17 = arith.constant 0 : index
    %c0_18 = arith.constant 0 : index
    %54 = vector.load %arg8[%c0_17, %c0_18] : memref<2x128xf32, #tpu.memory_space<vmem>>, vector<2x128xf32>
    tpu.vector_store %arg8[%c0_17, %c0_18], %53 {strides = array<i32>} : memref<2x128xf32, #tpu.memory_space<vmem>>, vector<2x128xf32>,
    return
  }
  func.func @transform_0(%arg0: i32) -> (i32, i32) {
    %c0_i32 = arith.constant 0 : i32
    %c0_i32_0 = arith.constant 0 : i32
    return %c0_i32, %arg0 : i32, i32
  }
  func.func @transform_1(%arg0: i32) -> (i32, i32) {
    %c0_i32 = arith.constant 0 : i32
    %c0_i32_0 = arith.constant 0 : i32
    %c0_i32_1 = arith.constant 0 : i32
    return %c0_i32, %c0_i32_0 : i32, i32
  }
  func.func @transform_2(%arg0: i32) -> (i32, i32) {
    %c0_i32 = arith.constant 0 : i32
    %c0_i32_0 = arith.constant 0 : i32
    %c0_i32_1 = arith.constant 0 : i32
    return %c0_i32, %c0_i32_0 : i32, i32
  }
  func.func @transform_3(%arg0: i32) -> (i32, i32) {
    %c0_i32 = arith.constant 0 : i32
    %c0_i32_0 = arith.constant 0 : i32
    %c0_i32_1 = arith.constant 0 : i32
    return %c0_i32, %c0_i32_0 : i32, i32
  }
  func.func @transform_4(%arg0: i32) -> (i32, i32) {
    %c0_i32 = arith.constant 0 : i32
    %c0_i32_0 = arith.constant 0 : i32
    %c0_i32_1 = arith.constant 0 : i32
    return %c0_i32, %c0_i32_0 : i32, i32
  }
  func.func @transform_5(%arg0: i32) -> (i32, i32) {
    %c0_i32 = arith.constant 0 : i32
    %c0_i32_0 = arith.constant 0 : i32
    %c0_i32_1 = arith.constant 0 : i32
    return %c0_i32, %c0_i32_0 : i32, i32
  }
  func.func @transform_6(%arg0: i32) -> (i32, i32) {
    %c0_i32 = arith.constant 0 : i32
    %c0_i32_0 = arith.constant 0 : i32
    %c0_i32_1 = arith.constant 0 : i32
    return %c0_i32, %c0_i32_0 : i32, i32
  }
  func.func @transform_7(%arg0: i32) -> (i32, i32) {
    %c0_i32 = arith.constant 0 : i32
    %c0_i32_0 = arith.constant 0 : i32
    return %c0_i32, %arg0 : i32, i32
  }
}

</mosaic_0001>

<llo_original>
// kernel: tpu_custom_call.1
$region0: #{tpu_custom_call.1}
  #allocation0 [shape = 'u32[]', space=smem, size = 0x4, offset = 0x4, fixed_abs, tag = 'smem constant byte address 0x4 - core index']
  #allocation1 [shape = 'u32[144,128]{1,0:T(1,128)}', space=vmem, size = 0x12000, scoped, tag = 'internal scratch']
  %s0 = inlined_call_operand.vmem [shape: f32[2,256], index: 0, kind: input, shape index: {}]
  %s1 = inlined_call_operand.vmem [shape: f32[64,2], index: 1, kind: input, shape index: {}]
  %s2 = inlined_call_operand.vmem [shape: f32[64,1], index: 2, kind: input, shape index: {}]
  %s3 = inlined_call_operand.vmem [shape: f32[64,64], index: 3, kind: input, shape index: {}]
  %s4 = inlined_call_operand.vmem [shape: f32[64,1], index: 4, kind: input, shape index: {}]
  %s5 = inlined_call_operand.vmem [shape: f32[64,2], index: 5, kind: input, shape index: {}]
  %s6 = inlined_call_operand.vmem [shape: f32[2,1], index: 6, kind: input, shape index: {}]
  %s7 = inlined_call_operand.hbm [shape: f32[2,256], index: 7, kind: output, shape index: {}]
  %s8 = sld [smem:[#allocation0]]
  $region61: #{tpu_custom_call.1} parent=0
    _
  %s10 = ssub.s32 1, %s8
  %s11 = scalar_select 0, %s10, %s8
  $region1: #{tpu_custom_call.1} parent=0
    #allocation2 [shape = 'u8[2048]{0}', space=vmem, size = 0x800, scoped, tag = 'output window, operand 0']
    #allocation3 [shape = 's32[2]{0}', space=sflag, size = 0x8, scoped, tag = 'scoped memory for tpu_custom_call.1']
    %12 = vsyncpa [#allocation3], 0
    %s13 = scalar_lea.sflag [#allocation3], 1
    %14 = vsyncpa %s13, 0
    loop: start=0, step=1, limit=4
    $region2: #{tpu_custom_call.1} parent=1 // loop_pre_header
      _
    $region3: #{tpu_custom_call.1} parent=1 // loop_header
      %s16 = sphi 0, %s20
      %p17 = scmp.ge.s32.totalorder %s16, 4
      %s26 = sphi 0, %s28
      %s29 = sphi 0, %s26
      %s30 = sphi 0, %s29
      %s46 = sphi 0, %s30
      %s50 = sphi 0, %s50
      %s52 = sphi 0, %s50
      %s53 = sphi 0, %s52
      %s67 = sphi 0, %s53
      %s71 = sphi 0, %s71
      %s73 = sphi 0, %s71
      %s74 = sphi 0, %s73
      %s88 = sphi 0, %s74
      %s92 = sphi 0, %s92
      %s94 = sphi 0, %s92
      %s95 = sphi 0, %s94
      %s109 = sphi 0, %s95
      %s113 = sphi 0, %s113
      %s115 = sphi 0, %s113
      %s116 = sphi 0, %s115
      %s130 = sphi 0, %s116
      %s134 = sphi 0, %s134
      %s136 = sphi 0, %s134
      %s137 = sphi 0, %s136
      %s151 = sphi 0, %s137
      %s155 = sphi 0, %s155
      %s157 = sphi 0, %s155
      %s158 = sphi 0, %s157
      %s172 = sphi 0, %s158
      %s178 = sphi 0, %s180
      %s181 = sphi 0, %s178
      %s182 = sphi 0, %s181
      %s198 = sphi 0, %s182
    $region4: #{tpu_custom_call.1} parent=1 // loop_header_branch
      %19 = sbr.rel (%p17) target = $region8
    $region5: #{tpu_custom_call.1} parent=1 // loop_body
      %s21 = ssub.s32 %s16, 1
      %s22 = ssub.s32 %s16, 2
      %s23 = sadd.s32 %s16, 1
      %s24 = ssub.s32 %s16, %s23
      %p25 = scmp.eq.s32.totalorder %s24, 0
      %s27 = sadd.s32 %s26, 1
      %s28 = scalar_select %p25, %s26, %s27
      %p31 = pneg %p25
      %p32 = scmp.eq.s32.totalorder %s16, 1
      %p33 = por %p31, %p32
      %p34 = scmp.ne.s32.totalorder %s26, %s29
      %p35 = scmp.eq.s32.totalorder %s16, 0
      %p36 = por %p34, %p35
      %p37 = scmp.ne.s32.totalorder %s26, %s29
      %p38 = scmp.eq.s32.totalorder %s21, 1
      %p39 = por %p37, %p38
      %p40 = scmp.ne.s32.totalorder %s29, %s30
      %p41 = scmp.eq.s32.totalorder %s21, 0
      %p42 = por %p40, %p41
      %p43 = scmp.ne.s32.totalorder %s29, %s30
      %p44 = scmp.eq.s32.totalorder %s22, 1
      %p45 = por %p43, %p44
      %p47 = scmp.ne.s32.totalorder %s30, %s46
      %p48 = scmp.eq.s32.totalorder %s22, 0
      %p49 = por %p47, %p48
      %s51 = sadd.s32 %s50, 1
      %p54 = scmp.eq.s32.totalorder %s16, 1
      %p55 = scmp.ne.s32.totalorder %s50, %s52
      %p56 = scmp.eq.s32.totalorder %s16, 0
      %p57 = por %p55, %p56
      %p58 = scmp.ne.s32.totalorder %s50, %s52
      %p59 = scmp.eq.s32.totalorder %s21, 1
      %p60 = por %p58, %p59
      %p61 = scmp.ne.s32.totalorder %s52, %s53
      %p62 = scmp.eq.s32.totalorder %s21, 0
      %p63 = por %p61, %p62
      %p64 = scmp.ne.s32.totalorder %s52, %s53
      %p65 = scmp.eq.s32.totalorder %s22, 1
      %p66 = por %p64, %p65
      %p68 = scmp.ne.s32.totalorder %s53, %s67
      %p69 = scmp.eq.s32.totalorder %s22, 0
      %p70 = por %p68, %p69
      %s72 = sadd.s32 %s71, 1
      %p75 = scmp.eq.s32.totalorder %s16, 1
      %p76 = scmp.ne.s32.totalorder %s71, %s73
      %p77 = scmp.eq.s32.totalorder %s16, 0
      %p78 = por %p76, %p77
      %p79 = scmp.ne.s32.totalorder %s71, %s73
      %p80 = scmp.eq.s32.totalorder %s21, 1
      %p81 = por %p79, %p80
      %p82 = scmp.ne.s32.totalorder %s73, %s74
      %p83 = scmp.eq.s32.totalorder %s21, 0
      %p84 = por %p82, %p83
      %p85 = scmp.ne.s32.totalorder %s73, %s74
      %p86 = scmp.eq.s32.totalorder %s22, 1
      %p87 = por %p85, %p86
      %p89 = scmp.ne.s32.totalorder %s74, %s88
      %p90 = scmp.eq.s32.totalorder %s22, 0
      %p91 = por %p89, %p90
      %s93 = sadd.s32 %s92, 1
      %p96 = scmp.eq.s32.totalorder %s16, 1
      %p97 = scmp.ne.s32.totalorder %s92, %s94
      %p98 = scmp.eq.s32.totalorder %s16, 0
      %p99 = por %p97, %p98
      %p100 = scmp.ne.s32.totalorder %s92, %s94
      %p101 = scmp.eq.s32.totalorder %s21, 1
      %p102 = por %p100, %p101
      %p103 = scmp.ne.s32.totalorder %s94, %s95
      %p104 = scmp.eq.s32.totalorder %s21, 0
      %p105 = por %p103, %p104
      %p106 = scmp.ne.s32.totalorder %s94, %s95
      %p107 = scmp.eq.s32.totalorder %s22, 1
      %p108 = por %p106, %p107
      %p110 = scmp.ne.s32.totalorder %s95, %s109
      %p111 = scmp.eq.s32.totalorder %s22, 0
      %p112 = por %p110, %p111
      %s114 = sadd.s32 %s113, 1
      %p117 = scmp.eq.s32.totalorder %s16, 1
      %p118 = scmp.ne.s32.totalorder %s113, %s115
      %p119 = scmp.eq.s32.totalorder %s16, 0
      %p120 = por %p118, %p119
      %p121 = scmp.ne.s32.totalorder %s113, %s115
      %p122 = scmp.eq.s32.totalorder %s21, 1
      %p123 = por %p121, %p122
      %p124 = scmp.ne.s32.totalorder %s115, %s116
      %p125 = scmp.eq.s32.totalorder %s21, 0
      %p126 = por %p124, %p125
      %p127 = scmp.ne.s32.totalorder %s115, %s116
      %p128 = scmp.eq.s32.totalorder %s22, 1
      %p129 = por %p127, %p128
      %p131 = scmp.ne.s32.totalorder %s116, %s130
      %p132 = scmp.eq.s32.totalorder %s22, 0
      %p133 = por %p131, %p132
      %s135 = sadd.s32 %s134, 1
      %p138 = scmp.eq.s32.totalorder %s16, 1
      %p139 = scmp.ne.s32.totalorder %s134, %s136
      %p140 = scmp.eq.s32.totalorder %s16, 0
      %p141 = por %p139, %p140
      %p142 = scmp.ne.s32.totalorder %s134, %s136
      %p143 = scmp.eq.s32.totalorder %s21, 1
      %p144 = por %p142, %p143
      %p145 = scmp.ne.s32.totalorder %s136, %s137
      %p146 = scmp.eq.s32.totalorder %s21, 0
      %p147 = por %p145, %p146
      %p148 = scmp.ne.s32.totalorder %s136, %s137
      %p149 = scmp.eq.s32.totalorder %s22, 1
      %p150 = por %p148, %p149
      %p152 = scmp.ne.s32.totalorder %s137, %s151
      %p153 = scmp.eq.s32.totalorder %s22, 0
      %p154 = por %p152, %p153
      %s156 = sadd.s32 %s155, 1
      %p159 = scmp.eq.s32.totalorder %s16, 1
      %p160 = scmp.ne.s32.totalorder %s155, %s157
      %p161 = scmp.eq.s32.totalorder %s16, 0
      %p162 = por %p160, %p161
      %p163 = scmp.ne.s32.totalorder %s155, %s157
      %p164 = scmp.eq.s32.totalorder %s21, 1
      %p165 = por %p163, %p164
      %p166 = scmp.ne.s32.totalorder %s157, %s158
      %p167 = scmp.eq.s32.totalorder %s21, 0
      %p168 = por %p166, %p167
      %p169 = scmp.ne.s32.totalorder %s157, %s158
      %p170 = scmp.eq.s32.totalorder %s22, 1
      %p171 = por %p169, %p170
      %p173 = scmp.ne.s32.totalorder %s158, %s172
      %p174 = scmp.eq.s32.totalorder %s22, 0
      %p175 = por %p173, %p174
      %s176 = ssub.s32 %s16, %s23
      %p177 = scmp.eq.s32.totalorder %s176, 0
      %s179 = sadd.s32 %s178, 1
      %s180 = scalar_select %p177, %s178, %s179
      %p183 = pneg %p177
      %p184 = scmp.eq.s32.totalorder %s16, 1
      %p185 = por %p183, %p184
      %p186 = scmp.ne.s32.totalorder %s178, %s181
      %p187 = scmp.eq.s32.totalorder %s16, 0
      %p188 = por %p186, %p187
      %p189 = scmp.ne.s32.totalorder %s178, %s181
      %p190 = scmp.eq.s32.totalorder %s21, 1
      %p191 = por %p189, %p190
      %p192 = scmp.ne.s32.totalorder %s181, %s182
      %p193 = scmp.eq.s32.totalorder %s21, 0
      %p194 = por %p192, %p193
      %p195 = scmp.ne.s32.totalorder %s181, %s182
      %p196 = scmp.eq.s32.totalorder %s22, 1
      %p197 = por %p195, %p196
      %p199 = scmp.ne.s32.totalorder %s182, %s198
      %p200 = scmp.eq.s32.totalorder %s22, 0
      %p201 = por %p199, %p200
      %p202 = scmp.le.s32.totalorder 1, %s16
      %p203 = scmp.lt.s32.totalorder %s16, 3
      %p204 = pnand %p202, %p203
      %p205 = pneg %p204
      // Predicated region
      $region9: #{tpu_custom_call.1} parent=5 // pred_check
        _
      $region10: #{tpu_custom_call.1} parent=5 // pred_check_branch
        %207 = sbr.rel (%p204) target = $region12
      $region11: #{tpu_custom_call.1} parent=5 // pred_region
        %s208 = ssub.s32 %s16, 1
        // Predicated region
        $region13: #{tpu_custom_call.1} parent=11 // pred_check
          %p209 = pneg %p63
        $region14: #{tpu_custom_call.1} parent=11 // pred_check_branch
          %211 = sbr.rel (%p209) target = $region16
        $region15: #{tpu_custom_call.1} parent=11 // pred_region
          _
        $region16: #{tpu_custom_call.1} parent=11 // pred_fallthru
          _
        // Predicated region
        $region17: #{tpu_custom_call.1} parent=11 // pred_check
          %p212 = pneg %p84
        $region18: #{tpu_custom_call.1} parent=11 // pred_check_branch
          %214 = sbr.rel (%p212) target = $region20
        $region19: #{tpu_custom_call.1} parent=11 // pred_region
          _
        $region20: #{tpu_custom_call.1} parent=11 // pred_fallthru
          _
        // Predicated region
        $region21: #{tpu_custom_call.1} parent=11 // pred_check
          %p215 = pneg %p105
        $region22: #{tpu_custom_call.1} parent=11 // pred_check_branch
          %217 = sbr.rel (%p215) target = $region24
        $region23: #{tpu_custom_call.1} parent=11 // pred_region
          _
        $region24: #{tpu_custom_call.1} parent=11 // pred_fallthru
          _
        // Predicated region
        $region25: #{tpu_custom_call.1} parent=11 // pred_check
          %p218 = pneg %p126
        $region26: #{tpu_custom_call.1} parent=11 // pred_check_branch
          %220 = sbr.rel (%p218) target = $region28
        $region27: #{tpu_custom_call.1} parent=11 // pred_region
          _
        $region28: #{tpu_custom_call.1} parent=11 // pred_fallthru
          _
        // Predicated region
        $region29: #{tpu_custom_call.1} parent=11 // pred_check
          %p221 = pneg %p147
        $region30: #{tpu_custom_call.1} parent=11 // pred_check_branch
          %223 = sbr.rel (%p221) target = $region32
        $region31: #{tpu_custom_call.1} parent=11 // pred_region
          _
        $region32: #{tpu_custom_call.1} parent=11 // pred_fallthru
          _
        // Predicated region
        $region33: #{tpu_custom_call.1} parent=11 // pred_check
          %p224 = pneg %p168
        $region34: #{tpu_custom_call.1} parent=11 // pred_check_branch
          %226 = sbr.rel (%p224) target = $region36
        $region35: #{tpu_custom_call.1} parent=11 // pred_region
          _
        $region36: #{tpu_custom_call.1} parent=11 // pred_fallthru
          _
      $region12: #{tpu_custom_call.1} parent=5 // pred_fallthru
        _
      %p227 = scmp.lt.s32.totalorder %s16, 2
      // Predicated region
      $region37: #{tpu_custom_call.1} parent=5 // pred_check
        %p228 = pneg %p227
      $region38: #{tpu_custom_call.1} parent=5 // pred_check_branch
        %230 = sbr.rel (%p228) target = $region40
      $region39: #{tpu_custom_call.1} parent=5 // pred_region
        // Predicated region
        $region41: #{tpu_custom_call.1} parent=39 // pred_check
          %p231 = pneg %p36
        $region42: #{tpu_custom_call.1} parent=39 // pred_check_branch
          %233 = sbr.rel (%p231) target = $region44
        $region43: #{tpu_custom_call.1} parent=39 // pred_region
          %p234 = scmp.lt.s32.totalorder %s16, 1
          %s235 = scalar_select %p234, %s16, 1
          %s236 = smul.addr %s235, 2
          %s237 = scalar_lea.vmem %s0, %s236
        $region44: #{tpu_custom_call.1} parent=39 // pred_fallthru
          _
      $region40: #{tpu_custom_call.1} parent=5 // pred_fallthru
        _
      %p238 = scmp.le.s32.totalorder 1, %s16
      %p239 = scmp.lt.s32.totalorder %s16, 3
      %p240 = pnand %p238, %p239
      %p241 = pneg %p240
      // Predicated region
      $region45: #{tpu_custom_call.1} parent=5 // pred_check
        _
      $region46: #{tpu_custom_call.1} parent=5 // pred_check_branch
        %243 = sbr.rel (%p240) target = $region48
      $region47: #{tpu_custom_call.1} parent=5 // pred_region
        %s244 = ssub.s32 %s16, 1
        %p245 = scmp.lt.s32.totalorder %s21, 1
        %s246 = scalar_select %p245, %s21, 1
        %s247 = smul.addr %s246, 2
        %s248 = scalar_lea.vmem %s0, %s247
        %p249 = pneg %p42
        %p250 = pneg %p39
        %p251 = pneg %p63
        %p252 = pneg %p60
        %p253 = pneg %p84
        %p254 = pneg %p81
        %p255 = pneg %p105
        %p256 = pneg %p102
        %p257 = pneg %p126
        %p258 = pneg %p123
        %p259 = pneg %p147
        %p260 = pneg %p144
        %p261 = pneg %p168
        %p262 = pneg %p165
        %p263 = pneg %p194
        %p264 = pneg %p191
        %s265 = sand.u32 %s181, 1
        %s266 = scalar_lea.sflag [#allocation3], %s265
        %s267 = sand.u32 %s181, 1
        %s268 = smul.addr %s267, 2
        %s269 = scalar_lea.vmem [#allocation2], %s268
        %p270 = scmp.lt.s32.totalorder %s21, 1
        %s271 = scalar_select %p270, %s21, 1
        %s272 = smul.addr %s271, 2
        %s273 = scalar_lea.vmem %s0, %s272
        %v274 = vld [vmem:[%s273] sm:$0x3]
        %v275 = vld [vmem:[%s1] sm:$0xff]
        %v276 = vld [vmem:[%s1 + $0x8] sm:$0xff]
        %v277 = vld [vmem:[%s1 + $0x10] sm:$0xff]
        %v278 = vld [vmem:[%s1 + $0x18] sm:$0xff]
        %v279 = vld [vmem:[%s1 + $0x20] sm:$0xff]
        %v280 = vld [vmem:[%s1 + $0x28] sm:$0xff]
        %v281 = vld [vmem:[%s1 + $0x30] sm:$0xff]
        %v282 = vld [vmem:[%s1 + $0x38] sm:$0xff]
        %v283 = vld [vmem:[%s2] sm:$0xff]
        %v284 = vld [vmem:[%s2 + $0x8] sm:$0xff]
        %v285 = vld [vmem:[%s2 + $0x10] sm:$0xff]
        %v286 = vld [vmem:[%s2 + $0x18] sm:$0xff]
        %v287 = vld [vmem:[%s2 + $0x20] sm:$0xff]
        %v288 = vld [vmem:[%s2 + $0x28] sm:$0xff]
        %v289 = vld [vmem:[%s2 + $0x30] sm:$0xff]
        %v290 = vld [vmem:[%s2 + $0x38] sm:$0xff]
        %292 = vset.pattern.permute.xlu0 0
        %293 = vperm.xlu0 %292, %v275
        %v294 = vpop.permute.xlu0 %293
        %297 = vset.pattern.permute.xlu0 0
        %298 = vperm.xlu0 %297, %v276
        %v299 = vpop.permute.xlu0 %298
        %302 = vset.pattern.permute.xlu0 0
        %303 = vperm.xlu0 %302, %v277
        %v304 = vpop.permute.xlu0 %303
        %307 = vset.pattern.permute.xlu0 0
        %308 = vperm.xlu0 %307, %v278
        %v309 = vpop.permute.xlu0 %308
        %312 = vset.pattern.permute.xlu0 0
        %313 = vperm.xlu0 %312, %v279
        %v314 = vpop.permute.xlu0 %313
        %317 = vset.pattern.permute.xlu0 0
        %318 = vperm.xlu0 %317, %v280
        %v319 = vpop.permute.xlu0 %318
        %322 = vset.pattern.permute.xlu0 0
        %323 = vperm.xlu0 %322, %v281
        %v324 = vpop.permute.xlu0 %323
        %327 = vset.pattern.permute.xlu0 0
        %328 = vperm.xlu0 %327, %v282
        %v329 = vpop.permute.xlu0 %328
        %v331 = vlaneseq
        %v332 = vshrl.u32 %v331, 7
        %v333 = vsub.s32 0, %v332
        %v334 = vrot.slane %v274, %v333
        %v335 = vmul.f32 %v294, %v334
        %v336 = vmul.f32 %v299, %v334
        %v337 = vmul.f32 %v304, %v334
        %v338 = vmul.f32 %v309, %v334
        %v339 = vmul.f32 %v314, %v334
        %v340 = vmul.f32 %v319, %v334
        %v341 = vmul.f32 %v324, %v334
        %v342 = vmul.f32 %v329, %v334
        %344 = vset.pattern.permute.xlu0 0
        %345 = vperm.xlu0 %344, %v283
        %v346 = vpop.permute.xlu0 %345
        %349 = vset.pattern.permute.xlu0 0
        %350 = vperm.xlu0 %349, %v284
        %v351 = vpop.permute.xlu0 %350
        %354 = vset.pattern.permute.xlu0 0
        %355 = vperm.xlu0 %354, %v285
        %v356 = vpop.permute.xlu0 %355
        %359 = vset.pattern.permute.xlu0 0
        %360 = vperm.xlu0 %359, %v286
        %v361 = vpop.permute.xlu0 %360
        %364 = vset.pattern.permute.xlu0 0
        %365 = vperm.xlu0 %364, %v287
        %v366 = vpop.permute.xlu0 %365
        %369 = vset.pattern.permute.xlu0 0
        %370 = vperm.xlu0 %369, %v288
        %v371 = vpop.permute.xlu0 %370
        %374 = vset.pattern.permute.xlu0 0
        %375 = vperm.xlu0 %374, %v289
        %v376 = vpop.permute.xlu0 %375
        %379 = vset.pattern.permute.xlu0 0
        %380 = vperm.xlu0 %379, %v290
        %v381 = vpop.permute.xlu0 %380
        %v383 = vadd.f32 %v346, %v335
        %v384 = vadd.f32 %v351, %v336
        %v385 = vadd.f32 %v356, %v337
        %v386 = vadd.f32 %v361, %v338
        %v387 = vadd.f32 %v366, %v339
        %v388 = vadd.f32 %v371, %v340
        %v389 = vadd.f32 %v376, %v341
        %v390 = vadd.f32 %v381, %v342
        %391 = vset.pattern.permute.xlu0 1
        %392 = vperm.xlu0 %391, %v275
        %v393 = vpop.permute.xlu0 %392
        %395 = vset.pattern.permute.xlu0 1
        %396 = vperm.xlu0 %395, %v276
        %v397 = vpop.permute.xlu0 %396
        %399 = vset.pattern.permute.xlu0 1
        %400 = vperm.xlu0 %399, %v277
        %v401 = vpop.permute.xlu0 %400
        %403 = vset.pattern.permute.xlu0 1
        %404 = vperm.xlu0 %403, %v278
        %v405 = vpop.permute.xlu0 %404
        %407 = vset.pattern.permute.xlu0 1
        %408 = vperm.xlu0 %407, %v279
        %v409 = vpop.permute.xlu0 %408
        %411 = vset.pattern.permute.xlu0 1
        %412 = vperm.xlu0 %411, %v280
        %v413 = vpop.permute.xlu0 %412
        %415 = vset.pattern.permute.xlu0 1
        %416 = vperm.xlu0 %415, %v281
        %v417 = vpop.permute.xlu0 %416
        %419 = vset.pattern.permute.xlu0 1
        %420 = vperm.xlu0 %419, %v282
        %v421 = vpop.permute.xlu0 %420
        %v423 = vlaneseq
        %v424 = vshrl.u32 %v423, 7
        %v425 = vsub.s32 1, %v424
        %v426 = vrot.slane %v274, %v425
        %v427 = vmul.f32 %v393, %v426
        %v428 = vmul.f32 %v397, %v426
        %v429 = vmul.f32 %v401, %v426
        %v430 = vmul.f32 %v405, %v426
        %v431 = vmul.f32 %v409, %v426
        %v432 = vmul.f32 %v413, %v426
        %v433 = vmul.f32 %v417, %v426
        %v434 = vmul.f32 %v421, %v426
        %v435 = vadd.f32 %v383, %v427
        %v436 = vadd.f32 %v384, %v428
        %v437 = vadd.f32 %v385, %v429
        %v438 = vadd.f32 %v386, %v430
        %v439 = vadd.f32 %v387, %v431
        %v440 = vadd.f32 %v388, %v432
        %v441 = vadd.f32 %v389, %v433
        %v442 = vadd.f32 %v390, %v434
        %v443 = vmax.f32 %v435, 0.0
        %v444 = vmax.f32 %v436, 0.0
        %v445 = vmax.f32 %v437, 0.0
        %v446 = vmax.f32 %v438, 0.0
        %v447 = vmax.f32 %v439, 0.0
        %v448 = vmax.f32 %v440, 0.0
        %v449 = vmax.f32 %v441, 0.0
        %v450 = vmax.f32 %v442, 0.0
        %v451 = vld [vmem:[%s3] sm:$0xff]
        %v452 = vld [vmem:[%s3 + $0x8] sm:$0xff]
        %v453 = vld [vmem:[%s3 + $0x10] sm:$0xff]
        %v454 = vld [vmem:[%s3 + $0x18] sm:$0xff]
        %v455 = vld [vmem:[%s3 + $0x20] sm:$0xff]
        %v456 = vld [vmem:[%s3 + $0x28] sm:$0xff]
        %v457 = vld [vmem:[%s3 + $0x30] sm:$0xff]
        %v458 = vld [vmem:[%s3 + $0x38] sm:$0xff]
        %v459 = vld [vmem:[%s4] sm:$0xff]
        %v460 = vld [vmem:[%s4 + $0x8] sm:$0xff]
        %v461 = vld [vmem:[%s4 + $0x10] sm:$0xff]
        %v462 = vld [vmem:[%s4 + $0x18] sm:$0xff]
        %v463 = vld [vmem:[%s4 + $0x20] sm:$0xff]
        %v464 = vld [vmem:[%s4 + $0x28] sm:$0xff]
        %v465 = vld [vmem:[%s4 + $0x30] sm:$0xff]
        %v466 = vld [vmem:[%s4 + $0x38] sm:$0xff]
        %468 = vset.pattern.permute.xlu0 0
        %469 = vperm.xlu0 %468, %v459
        %v470 = vpop.permute.xlu0 %469
        %473 = vset.pattern.permute.xlu0 0
        %474 = vperm.xlu0 %473, %v460
        %v475 = vpop.permute.xlu0 %474
        %478 = vset.pattern.permute.xlu0 0
        %479 = vperm.xlu0 %478, %v461
        %v480 = vpop.permute.xlu0 %479
        %483 = vset.pattern.permute.xlu0 0
        %484 = vperm.xlu0 %483, %v462
        %v485 = vpop.permute.xlu0 %484
        %488 = vset.pattern.permute.xlu0 0
        %489 = vperm.xlu0 %488, %v463
        %v490 = vpop.permute.xlu0 %489
        %493 = vset.pattern.permute.xlu0 0
        %494 = vperm.xlu0 %493, %v464
        %v495 = vpop.permute.xlu0 %494
        %498 = vset.pattern.permute.xlu0 0
        %499 = vperm.xlu0 %498, %v465
        %v500 = vpop.permute.xlu0 %499
        %503 = vset.pattern.permute.xlu0 0
        %504 = vperm.xlu0 %503, %v466
        %v505 = vpop.permute.xlu0 %504
        %vm507 = vcmask 523264
        %v509 = vsel %vm507, %v451, 0
        %v512 = vsel %vm507, %v452, 0
        %v515 = vsel %vm507, %v453, 0
        %v518 = vsel %vm507, %v454, 0
        %v521 = vsel %vm507, %v455, 0
        %v524 = vsel %vm507, %v456, 0
        %v527 = vsel %vm507, %v457, 0
        %v530 = vsel %vm507, %v458, 0
        %532 = vmatprep.subr.mxu0 0.0
        %533 = vmatpush1.msra.mxu0 0.0
        %534 = vmatprep.subr.mxu0 0.0
        %535 = vmatpush1.msra.mxu0 0.0
        %536 = vmatprep.subr.mxu0 0.0
        %537 = vmatpush1.msra.mxu0 0.0
        %538 = vmatprep.subr.mxu0 0.0
        %539 = vmatpush1.msra.mxu0 0.0
        %540 = vmatprep.subr.mxu0 0.0
        %541 = vmatpush1.msra.mxu0 0.0
        %542 = vmatprep.subr.mxu0 0.0
        %543 = vmatpush1.msra.mxu0 0.0
        %544 = vmatprep.subr.mxu0 0.0
        %545 = vmatpush1.msra.mxu0 0.0
        %546 = vmatprep.subr.mxu0 0.0
        %547 = vmatpush1.msra.mxu0 0.0
        %548 = vmatprep.subr.mxu0 0.0
        %549 = vmatpush1.msra.mxu0 %v450
        %550 = vmatprep.subr.mxu0 0.0
        %551 = vmatpush1.msra.mxu0 %v449
        %552 = vmatprep.subr.mxu0 0.0
        %553 = vmatpush1.msra.mxu0 %v448
        %554 = vmatprep.subr.mxu0 0.0
        %555 = vmatpush1.msra.mxu0 %v447
        %556 = vmatprep.subr.mxu0 0.0
        %557 = vmatpush1.msra.mxu0 %v446
        %558 = vmatprep.subr.mxu0 0.0
        %559 = vmatpush1.msra.mxu0 %v445
        %560 = vmatprep.subr.mxu0 0.0
        %561 = vmatpush1.msra.mxu0 %v444
        %562 = vmatprep.subr.mxu0 0.0
        %563 = vmatpush1.msra.mxu0 %v443
        %564 = vmatprep.subr.mxu0 0.0
        %565 = vmatpush2.msra.mxu0 0.0
        %566 = vmatprep.subr.mxu0 0.0
        %567 = vmatpush2.msra.mxu0 0.0
        %568 = vmatprep.subr.mxu0 0.0
        %569 = vmatpush2.msra.mxu0 0.0
        %570 = vmatprep.subr.mxu0 0.0
        %571 = vmatpush2.msra.mxu0 0.0
        %572 = vmatprep.subr.mxu0 0.0
        %573 = vmatpush2.msra.mxu0 0.0
        %574 = vmatprep.subr.mxu0 0.0
        %575 = vmatpush2.msra.mxu0 0.0
        %576 = vmatprep.subr.mxu0 0.0
        %577 = vmatpush2.msra.mxu0 0.0
        %578 = vmatprep.subr.mxu0 0.0
        %579 = vmatpush2.msra.mxu0 0.0
        %580 = vmatprep.subr.mxu0 0.0
        %581 = vmatpush2.msra.mxu0 0.0
        %582 = vmatprep.subr.mxu0 0.0
        %583 = vmatpush2.msra.mxu0 0.0
        %584 = vmatprep.subr.mxu0 0.0
        %585 = vmatpush2.msra.mxu0 0.0
        %586 = vmatprep.subr.mxu0 0.0
        %587 = vmatpush2.msra.mxu0 0.0
        %588 = vmatprep.subr.mxu0 0.0
        %589 = vmatpush2.msra.mxu0 0.0
        %590 = vmatprep.subr.mxu0 0.0
        %591 = vmatpush2.msra.mxu0 0.0
        %592 = vmatprep.subr.mxu0 0.0
        %593 = vmatpush2.msra.mxu0 0.0
        %594 = vmatprep.subr.mxu0 0.0
        %595 = vmatpush2.msra.mxu0 0.0
        %596 = vmatprep.mubr.f32.mxu0 0.0
        %597 = vmatmul.mubr.f32.gmra.mxu0 %v509
        %v598 = vpop.f32.mrf.mxu0
        %v599 = vadd.f32 %v470, %v598
        %v600 = vpop.f32.mrf.mxu0
        %601 = vmatprep.mubr.f32.mxu0 0.0
        %602 = vmatmul.mubr.f32.gmra.mxu0 %v512
        %v603 = vpop.f32.mrf.mxu0
        %v604 = vadd.f32 %v475, %v603
        %v605 = vpop.f32.mrf.mxu0
        %606 = vmatprep.mubr.f32.mxu0 0.0
        %607 = vmatmul.mubr.f32.gmra.mxu0 %v515
        %v608 = vpop.f32.mrf.mxu0
        %v609 = vadd.f32 %v480, %v608
        %v610 = vpop.f32.mrf.mxu0
        %611 = vmatprep.mubr.f32.mxu0 0.0
        %612 = vmatmul.mubr.f32.gmra.mxu0 %v518
        %v613 = vpop.f32.mrf.mxu0
        %v614 = vadd.f32 %v485, %v613
        %v615 = vpop.f32.mrf.mxu0
        %616 = vmatprep.mubr.f32.mxu0 0.0
        %617 = vmatmul.mubr.f32.gmra.mxu0 %v521
        %v618 = vpop.f32.mrf.mxu0
        %v619 = vadd.f32 %v490, %v618
        %v620 = vpop.f32.mrf.mxu0
        %621 = vmatprep.mubr.f32.mxu0 0.0
        %622 = vmatmul.mubr.f32.gmra.mxu0 %v524
        %v623 = vpop.f32.mrf.mxu0
        %v624 = vadd.f32 %v495, %v623
        %v625 = vpop.f32.mrf.mxu0
        %626 = vmatprep.mubr.f32.mxu0 0.0
        %627 = vmatmul.mubr.f32.gmra.mxu0 %v527
        %v628 = vpop.f32.mrf.mxu0
        %v629 = vadd.f32 %v500, %v628
        %v630 = vpop.f32.mrf.mxu0
        %631 = vmatprep.mubr.f32.mxu0 0.0
        %632 = vmatmul.mubr.f32.gmra.mxu0 %v530
        %v633 = vpop.f32.mrf.mxu0
        %v634 = vadd.f32 %v505, %v633
        %v635 = vpop.f32.mrf.mxu0
        %636 = vdwg.mxu0
        %v637 = vmax.f32 %v599, 0.0
        %v638 = vmax.f32 %v604, 0.0
        %v639 = vmax.f32 %v609, 0.0
        %v640 = vmax.f32 %v614, 0.0
        %v641 = vmax.f32 %v619, 0.0
        %v642 = vmax.f32 %v624, 0.0
        %v643 = vmax.f32 %v629, 0.0
        %v644 = vmax.f32 %v634, 0.0
        %v645 = vld [vmem:[%s5] sm:$0xff]
        %v646 = vld [vmem:[%s5 + $0x8] sm:$0xff]
        %v647 = vld [vmem:[%s5 + $0x10] sm:$0xff]
        %v648 = vld [vmem:[%s5 + $0x18] sm:$0xff]
        %v649 = vld [vmem:[%s5 + $0x20] sm:$0xff]
        %v650 = vld [vmem:[%s5 + $0x28] sm:$0xff]
        %v651 = vld [vmem:[%s5 + $0x30] sm:$0xff]
        %v652 = vld [vmem:[%s5 + $0x38] sm:$0xff]
        %v653 = vld [vmem:[%s6] sm:$0x3]
        %655 = vset.pattern.permute.xlu0 0
        %656 = vperm.xlu0 %655, %v645
        %v657 = vpop.permute.xlu0 %656
        %660 = vset.pattern.permute.xlu0 0
        %661 = vperm.xlu0 %660, %v646
        %v662 = vpop.permute.xlu0 %661
        %665 = vset.pattern.permute.xlu0 0
        %666 = vperm.xlu0 %665, %v647
        %v667 = vpop.permute.xlu0 %666
        %670 = vset.pattern.permute.xlu0 0
        %671 = vperm.xlu0 %670, %v648
        %v672 = vpop.permute.xlu0 %671
        %675 = vset.pattern.permute.xlu0 0
        %676 = vperm.xlu0 %675, %v649
        %v677 = vpop.permute.xlu0 %676
        %680 = vset.pattern.permute.xlu0 0
        %681 = vperm.xlu0 %680, %v650
        %v682 = vpop.permute.xlu0 %681
        %685 = vset.pattern.permute.xlu0 0
        %686 = vperm.xlu0 %685, %v651
        %v687 = vpop.permute.xlu0 %686
        %690 = vset.pattern.permute.xlu0 0
        %691 = vperm.xlu0 %690, %v652
        %v692 = vpop.permute.xlu0 %691
        %v694 = vmul.f32 %v657, %v637
        %v695 = vmul.f32 %v662, %v638
        %v696 = vmul.f32 %v667, %v639
        %v697 = vmul.f32 %v672, %v640
        %v698 = vmul.f32 %v677, %v641
        %v699 = vmul.f32 %v682, %v642
        %v700 = vmul.f32 %v687, %v643
        %v701 = vmul.f32 %v692, %v644
        %v702 = vadd.f32 %v694, %v695
        %v703 = vadd.f32 %v702, %v696
        %v704 = vadd.f32 %v703, %v697
        %v705 = vadd.f32 %v704, %v698
        %v706 = vadd.f32 %v705, %v699
        %v707 = vadd.f32 %v706, %v700
        %v708 = vadd.f32 %v707, %v701
        %v709 = vrot.slane %v708, 4
        %v710 = vadd.f32 %v708, %v709
        %v711 = vrot.slane %v710, 2
        %v712 = vadd.f32 %v710, %v711
        %v713 = vrot.slane %v712, 1
        %v714 = vadd.f32 %v712, %v713
        %716 = vset.pattern.permute.xlu0 0
        %717 = vperm.xlu0 %716, %v653
        %v718 = vpop.permute.xlu0 %717
        %v720 = vadd.f32 %v714, %v718
        %721 = vset.pattern.permute.xlu0 1
        %722 = vperm.xlu0 %721, %v645
        %v723 = vpop.permute.xlu0 %722
        %725 = vset.pattern.permute.xlu0 1
        %726 = vperm.xlu0 %725, %v646
        %v727 = vpop.permute.xlu0 %726
        %729 = vset.pattern.permute.xlu0 1
        %730 = vperm.xlu0 %729, %v647
        %v731 = vpop.permute.xlu0 %730
        %733 = vset.pattern.permute.xlu0 1
        %734 = vperm.xlu0 %733, %v648
        %v735 = vpop.permute.xlu0 %734
        %737 = vset.pattern.permute.xlu0 1
        %738 = vperm.xlu0 %737, %v649
        %v739 = vpop.permute.xlu0 %738
        %741 = vset.pattern.permute.xlu0 1
        %742 = vperm.xlu0 %741, %v650
        %v743 = vpop.permute.xlu0 %742
        %745 = vset.pattern.permute.xlu0 1
        %746 = vperm.xlu0 %745, %v651
        %v747 = vpop.permute.xlu0 %746
        %749 = vset.pattern.permute.xlu0 1
        %750 = vperm.xlu0 %749, %v652
        %v751 = vpop.permute.xlu0 %750
        %v753 = vmul.f32 %v723, %v637
        %v754 = vmul.f32 %v727, %v638
        %v755 = vmul.f32 %v731, %v639
        %v756 = vmul.f32 %v735, %v640
        %v757 = vmul.f32 %v739, %v641
        %v758 = vmul.f32 %v743, %v642
        %v759 = vmul.f32 %v747, %v643
        %v760 = vmul.f32 %v751, %v644
        %v761 = vadd.f32 %v753, %v754
        %v762 = vadd.f32 %v761, %v755
        %v763 = vadd.f32 %v762, %v756
        %v764 = vadd.f32 %v763, %v757
        %v765 = vadd.f32 %v764, %v758
        %v766 = vadd.f32 %v765, %v759
        %v767 = vadd.f32 %v766, %v760
        %v768 = vrot.slane %v767, 4
        %v769 = vadd.f32 %v767, %v768
        %v770 = vrot.slane %v769, 2
        %v771 = vadd.f32 %v769, %v770
        %v772 = vrot.slane %v771, 1
        %v773 = vadd.f32 %v771, %v772
        %v774 = vadd.f32 %v773, %v718
        %v776 = vrot.slane %v774, 1
        %v778 = vmax.f32 %v720, %v776
        %v779 = vsub.f32 %v720, %v778
        %v780 = vmul.f32 %v779, 1.442695
        %v781 = vpow.pop %v780
        %v783 = vrot.slane %v778, 7
        %v785 = vsub.f32 %v774, %v783
        %v786 = vmul.f32 %v785, 1.442695
        %v787 = vpow.pop %v786
        %v789 = vrot.slane %v787, 1
        %v791 = vadd.f32 %v781, %v789
        %v792 = vlog2.pop %v791
        %v793 = vmul.f32 %v792, 0.6931472
        %v794 = vadd.f32 %v778, %v793
        %v795 = vsub.f32 %v720, %v794
        %v797 = vrot.slane %v794, 7
        %v799 = vsub.f32 %v774, %v797
        %vm800 = vcmask 1040384
        %v801 = vsel %vm800, %v795, %v799
        %802 = vst [vmem:[%s269] sm:$0x3] %v801
        %s803 = sand.u32 %s181, 1
        %s804 = scalar_lea.sflag [#allocation3], %s803
        %s805 = sand.u32 %s181, 1
        %s806 = smul.addr %s805, 2
        %s807 = scalar_lea.vmem [#allocation2], %s806
        // Predicated region
        $region49: #{tpu_custom_call.1} parent=47 // pred_check
          %p808 = pneg %p191
        $region50: #{tpu_custom_call.1} parent=47 // pred_check_branch
          %810 = sbr.rel (%p808) target = $region52
        $region51: #{tpu_custom_call.1} parent=47 // pred_region
          %s812 = ssub.s32 32, 32
          %813 = vsyncadd %s804, %s812
          %s814 = smul.addr %s21, 32
          %s815 = scalar_lea.hbm %s7, %s814
          %s817 = sshll.u32 %s807, 4
          %s818 = int_to_ptr.vmem [resolvable:$true] %s817
          %820 = dma.vmem_to_hbm [thread:$0]  %s818, 32, %s815, %s804
        $region52: #{tpu_custom_call.1} parent=47 // pred_fallthru
          _
      $region48: #{tpu_custom_call.1} parent=5 // pred_fallthru
        _
      %p821 = scmp.le.s32.totalorder 2, %s16
      // Predicated region
      $region53: #{tpu_custom_call.1} parent=5 // pred_check
        %p822 = pneg %p821
      $region54: #{tpu_custom_call.1} parent=5 // pred_check_branch
        %824 = sbr.rel (%p822) target = $region56
      $region55: #{tpu_custom_call.1} parent=5 // pred_region
        %s825 = ssub.s32 %s16, 2
        // Predicated region
        $region57: #{tpu_custom_call.1} parent=55 // pred_check
          %p826 = pneg %p197
        $region58: #{tpu_custom_call.1} parent=55 // pred_check_branch
          %828 = sbr.rel (%p826) target = $region60
        $region59: #{tpu_custom_call.1} parent=55 // pred_region
          %s829 = sand.u32 %s182, 1
          %s830 = scalar_lea.sflag [#allocation3], %s829
          %s831 = sand.u32 %s182, 1
          %s832 = smul.addr %s831, 2
          %s833 = scalar_lea.vmem [#allocation2], %s832
          %834 = dma.done %s830, 32
        $region60: #{tpu_custom_call.1} parent=55 // pred_fallthru
          _
      $region56: #{tpu_custom_call.1} parent=5 // pred_fallthru
        _
    $region6: #{tpu_custom_call.1} parent=1 // loop_footer
      %s20 = sadd.s32 1, %s16
    $region7: #{tpu_custom_call.1} parent=1 // loop_footer_branch
      %15 = sbr.rel target = $region3
    $region8: #{tpu_custom_call.1} parent=1 // loop_exit
      _
    %835 = vsyncpa [#allocation3], 1
    %s836 = scalar_lea.sflag [#allocation3], 1
    %837 = vsyncpa %s836, 1

</llo_original>
